<compile_context>
chip_gen: v5e
topology: v5e:2x2
jax: 0.10.0
libtpu: 0.0.40
codegen_flags: <defaults>
</compile_context>

<pallas_src>
import functools

import jax
import jax.numpy as jnp
from jax import lax
from jax.experimental import pallas as pl
from jax.experimental.pallas import tpu as pltpu


def _softplus(x):
    # torch.nn.Softplus(beta=1, threshold=20): identity above the threshold.
    return jnp.where(x > 20.0, x, jnp.log1p(jnp.exp(jnp.minimum(x, 20.0))))


def _dis_loss_kernel(fake_ref, real_ref, w_ref, b_ref, out_ref,
                     accf_ref, accr_ref, *, batch, f_total, tile_f, needs_mask):
    """Grid: (cdiv(F, TILE_F),) — reduction over feature tiles.

    fake_ref : (B, TILE_F) fake-activation tile (native dtype)
    real_ref : (B, TILE_F) real-activation tile (native dtype)
    w_ref    : (1, TILE_F) f32 weight tile
    b_ref    : (1, 1)      f32 bias (SMEM, resident)
    out_ref  : (1, 1)      f32 loss (VMEM, resident across the grid)
    accf_ref : (B, 128)    f32 scratch — partial sums for D(fake)
    accr_ref : (B, 128)    f32 scratch — partial sums for D(real)
    """
    k = pl.program_id(0)

    @pl.when(k == 0)
    def _init():
        accf_ref[...] = jnp.zeros_like(accf_ref)
        accr_ref[...] = jnp.zeros_like(accr_ref)

    w = w_ref[...]  # (1, TILE_F), f32
    # Upcast right before the multiply (keeps math in f32 even for bf16 inputs).
    xf = fake_ref[...].astype(jnp.float32)
    xr = real_ref[...].astype(jnp.float32)

    pf = xf * w
    pr = xr * w
    if needs_mask:
        # Tail tile may read past F: mask the PRODUCT so any out-of-bounds
        # garbage (even NaN) is replaced by 0 after the multiply.
        lane = lax.broadcasted_iota(jnp.int32, (1, tile_f), 1) + k * tile_f
        valid = lane < f_total
        pf = jnp.where(valid, pf, 0.0)
        pr = jnp.where(valid, pr, 0.0)

    # Static chunked fold of TILE_F lanes down to 128 (pure VALU, no per-step
    # full-tile accumulator traffic, no per-step XLU reduce).
    nchunks = tile_f // 128
    sf = pf[:, 0:128]
    sr = pr[:, 0:128]
    for c in range(1, nchunks):
        sl = slice(c * 128, (c + 1) * 128)
        sf = sf + pf[:, sl]
        sr = sr + pr[:, sl]
    accf_ref[...] += sf
    accr_ref[...] += sr

    @pl.when(k == pl.num_programs(0) - 1)
    def _finalize():
        b = b_ref[0, 0]
        # Single tiny cross-lane reduce at the very end.
        df = jnp.sum(accf_ref[...], axis=-1, keepdims=True) + b   # (B, 1)
        dr = jnp.sum(accr_ref[...], axis=-1, keepdims=True) + b   # (B, 1)
        sp = _softplus(df) + _softplus(-dr)                       # (B, 1)
        total = jnp.sum(sp, axis=0, keepdims=True)                # (1, 1)
        out_ref[...] = total / jnp.float32(batch)


def _vmem_limits():
    """Generation-aware VMEM budgeting (v5e/v6e: 128 MiB, v7x: 64 MiB per TC)."""
    cap = None
    try:
        cap = int(pltpu.get_tpu_info().vmem_capacity_bytes)
    except Exception:
        cap = None
    if cap is None or cap <= 0:
        cap = 64 * 1024 * 1024  # conservative (v7x-sized) fallback
    vmem_limit = min(int(cap * 0.75), 96 * 1024 * 1024)  # leave compiler headroom
    tile_budget = vmem_limit // 2                         # pipeline buffers only
    return vmem_limit, tile_budget


def _pick_tile_f(F, rows, itemsize, budget_bytes, max_tile=8192):
    """Largest multiple-of-128 tile whose double-buffered footprint fits the
    budget.  Does NOT need to divide F (cdiv grid + in-kernel tail mask)."""
    rows_p = ((max(rows, 1) + 7) // 8) * 8          # VMEM sublane padding
    f_ceil = ((F + 127) // 128) * 128
    limit = min(f_ceil, max_tile)
    best = 128
    t = 128
    while t <= limit:
        foot = (2 * 2 * rows_p * t * itemsize       # fake + real, 2 buffers each
                + 2 * 8 * t * 4)                    # w tiles (padded), 2 buffers
        if foot <= budget_bytes:
            best = t
        t += 128
    return best


def dis_loss(fake, real, w, b, *, tile_f=None):
    """softplus(-D(real)).mean() + softplus(D(fake)).mean() for the linear
    critic D(x) = flatten(x) @ w + b.  fake/real: (B,C,H,W); w: (C*H*W,); b: (1,)."""
    B = fake.shape[0]
    assert real.shape == fake.shape, (fake.shape, real.shape)
    F = 1
    for s in fake.shape[1:]:
        F *= s

    dtype = jnp.promote_types(fake.dtype, real.dtype)
    # Reshape only — no concatenate, no forced f32 copy in HBM.
    xf = fake.reshape(B, F).astype(dtype)
    xr = real.reshape(B, F).astype(dtype)
    w2 = w.reshape(1, F).astype(jnp.float32)
    b2 = b.reshape(1, 1).astype(jnp.float32)

    vmem_limit, tile_budget = _vmem_limits()
    if tile_f is None:
        tile_f = _pick_tile_f(F, B, jnp.dtype(dtype).itemsize, tile_budget)
    assert tile_f > 0 and tile_f % 128 == 0, tile_f
    num_steps = pl.cdiv(F, tile_f)
    needs_mask = (F % tile_f) != 0

    kernel = functools.partial(
        _dis_loss_kernel, batch=B, f_total=F, tile_f=tile_f, needs_mask=needs_mask
    )

    out = pl.pallas_call(
        kernel,
        out_shape=jax.ShapeDtypeStruct((1, 1), jnp.float32),
        grid_spec=pltpu.PrefetchScalarGridSpec(
            num_scalar_prefetch=0,
            grid=(num_steps,),
            in_specs=[
                pl.BlockSpec((B, tile_f), lambda k: (0, k)),        # fake tiles
                pl.BlockSpec((B, tile_f), lambda k: (0, k)),        # real tiles
                pl.BlockSpec((1, tile_f), lambda k: (0, k)),        # weight tiles
                pl.BlockSpec(memory_space=pltpu.MemorySpace.SMEM),  # bias scalar
            ],
            out_specs=pl.BlockSpec((1, 1), lambda k: (0, 0)),       # resident scalar loss
            scratch_shapes=[
                pltpu.VMEM((B, 128), jnp.float32),                  # acc for D(fake)
                pltpu.VMEM((B, 128), jnp.float32),                  # acc for D(real)
            ],
        ),
        compiler_params=pltpu.CompilerParams(
            # Single grid axis is the F reduction -> "arbitrary".
            # (A leading "parallel" row axis only pays off on v7x's 2 TCs when
            #  2B >= 16; at this batch size it would just add overhead.)
            dimension_semantics=("arbitrary",),
            vmem_limit_bytes=vmem_limit,
        ),
    )(xf, xr, w2, b2)
    return out[0, 0]


if __name__ == "__main__":
    key = jax.random.PRNGKey(0)
    kf, kr, kw = jax.random.split(key, 3)

    B, C, H, W = 2, 4, 16, 16
    F = C * H * W

    fake = jax.random.normal(kf, (B, C, H, W), jnp.float32)
    real = jax.random.normal(kr, (B, C, H, W), jnp.float32)

    # Deterministic linear netD (critic) parameters, built in-script.
    w = jax.random.normal(kw, (F,), jnp.float32) / jnp.sqrt(jnp.float32(F))
    b = jnp.zeros((1,), jnp.float32)

    # NOTE: the torch forward's print(d_real.shape) side effect is omitted
    # (it does not affect the returned value).

    # Pure-JAX reference of the same forward.
    def ref(fake, real, w, b):
        df = fake.reshape(B, F) @ w + b[0]
        dr = real.reshape(B, F) @ w + b[0]
        sp = lambda x: jnp.where(x > 20.0, x, jnp.log1p(jnp.exp(jnp.minimum(x, 20.0))))
        return jnp.mean(sp(-dr)) + jnp.mean(sp(df))

    expected = ref(fake, real, w, b)

    # 1) auto-picked tile (single step at this toy F).
    loss = dis_loss(fake, real, w, b)
    jax.block_until_ready(loss)
    assert jnp.allclose(loss, expected, rtol=1e-4, atol=1e-5), (loss, expected)

    # 2) non-divisor tile: exercises the cdiv grid + in-kernel tail-mask path.
    loss2 = dis_loss(fake, real, w, b, tile_f=384)
    jax.block_until_ready(loss2)
    assert jnp.allclose(loss2, expected, rtol=1e-4, atol=1e-5), (loss2, expected)

    print("KERNEL_OK")
</pallas_src>

<mosaic_0001>
module attributes {stable_mosaic.version = 11 : i64} {
  func.func @_dis_loss_kernel(%arg0: i32, %arg1: memref<2x1024xf32, #tpu.memory_space<vmem>>, %arg2: memref<2x1024xf32, #tpu.memory_space<vmem>>, %arg3: memref<1x1024xf32, #tpu.memory_space<vmem>>, %arg4: memref<1x1xf32, #tpu.memory_space<smem>>, %arg5: memref<1x1xf32, #tpu.memory_space<vmem>>, %arg6: memref<2x128xf32, #tpu.memory_space<vmem>>, %arg7: memref<2x128xf32, #tpu.memory_space<vmem>>) attributes {dimension_semantics = [#tpu.dimension_semantics<arbitrary>], iteration_bounds = array<i64: 1>, scalar_prefetch = 0 : i64, scratch_operands = 2 : i64, tpu.core_type = #tpu.core_type<tc>, window_params = [{transform_indices = @transform_0, window_bounds = array<i64: 2, 1024>}, {transform_indices = @transform_1, window_bounds = array<i64: 2, 1024>}, {transform_indices = @transform_2, window_bounds = array<i64: 1, 1024>}, {transform_indices = @transform_3, window_bounds = array<i64: 1, 1>}, {pipeline_mode = #tpu.pipeline_mode<synchronous>, transform_indices = @transform_4, window_bounds = array<i64: 1, 1>}]} {
    %c0_i32 = arith.constant 0 : i32
    %0 = arith.cmpi eq, %arg0, %c0_i32 : i32
    %1 = arith.extui %0 : i1 to i32
    %c0_i32_0 = arith.constant 0 : i32
    %2 = arith.cmpi ne, %1, %c0_i32_0 : i32
    scf.if %2 {
      %cst = arith.constant 0.000000e+00 : f32
      %49 = vector.broadcast %cst : f32 to vector<2x128xf32>
      %c0_16 = arith.constant 0 : index
      %c0_17 = arith.constant 0 : index
      %50 = vector.load %arg6[%c0_16, %c0_17] : memref<2x128xf32, #tpu.memory_space<vmem>>, vector<2x128xf32>
      tpu.vector_store %arg6[%c0_16, %c0_17], %49 {strides = array<i32>} : memref<2x128xf32, #tpu.memory_space<vmem>>, vector<2x128xf32>,
      %cst_18 = arith.constant 0.000000e+00 : f32
      %51 = vector.broadcast %cst_18 : f32 to vector<2x128xf32>
      %c0_19 = arith.constant 0 : index
      %c0_20 = arith.constant 0 : index
      %52 = vector.load %arg7[%c0_19, %c0_20] : memref<2x128xf32, #tpu.memory_space<vmem>>, vector<2x128xf32>
      tpu.vector_store %arg7[%c0_19, %c0_20], %51 {strides = array<i32>} : memref<2x128xf32, #tpu.memory_space<vmem>>, vector<2x128xf32>,
    } else {
    }
    %c0 = arith.constant 0 : index
    %c0_1 = arith.constant 0 : index
    %3 = vector.load %arg3[%c0, %c0_1] : memref<1x1024xf32, #tpu.memory_space<vmem>>, vector<1x1024xf32>
    %c0_2 = arith.constant 0 : index
    %c0_3 = arith.constant 0 : index
    %4 = vector.load %arg1[%c0_2, %c0_3] : memref<2x1024xf32, #tpu.memory_space<vmem>>, vector<2x1024xf32>
    %c0_4 = arith.constant 0 : index
    %c0_5 = arith.constant 0 : index
    %5 = vector.load %arg2[%c0_4, %c0_5] : memref<2x1024xf32, #tpu.memory_space<vmem>>, vector<2x1024xf32>
    %6 = vector.broadcast %3 : vector<1x1024xf32> to vector<2x1024xf32>
    %7 = arith.mulf %4, %6 : vector<2x1024xf32>
    %8 = vector.broadcast %3 : vector<1x1024xf32> to vector<2x1024xf32>
    %9 = arith.mulf %5, %8 : vector<2x1024xf32>
    %10 = vector.extract_strided_slice %7 {offsets = [0, 0], sizes = [2, 128], strides = [1, 1]} : vector<2x1024xf32> to vector<2x128xf32>
    %11 = vector.extract_strided_slice %9 {offsets = [0, 0], sizes = [2, 128], strides = [1, 1]} : vector<2x1024xf32> to vector<2x128xf32>
    %12 = vector.extract_strided_slice %7 {offsets = [0, 128], sizes = [2, 128], strides = [1, 1]} : vector<2x1024xf32> to vector<2x128xf32>
    %13 = arith.addf %10, %12 : vector<2x128xf32>
    %14 = vector.extract_strided_slice %9 {offsets = [0, 128], sizes = [2, 128], strides = [1, 1]} : vector<2x1024xf32> to vector<2x128xf32>
    %15 = arith.addf %11, %14 : vector<2x128xf32>
    %16 = vector.extract_strided_slice %7 {offsets = [0, 256], sizes = [2, 128], strides = [1, 1]} : vector<2x1024xf32> to vector<2x128xf32>
    %17 = arith.addf %13, %16 : vector<2x128xf32>
    %18 = vector.extract_strided_slice %9 {offsets = [0, 256], sizes = [2, 128], strides = [1, 1]} : vector<2x1024xf32> to vector<2x128xf32>
    %19 = arith.addf %15, %18 : vector<2x128xf32>
    %20 = vector.extract_strided_slice %7 {offsets = [0, 384], sizes = [2, 128], strides = [1, 1]} : vector<2x1024xf32> to vector<2x128xf32>
    %21 = arith.addf %17, %20 : vector<2x128xf32>
    %22 = vector.extract_strided_slice %9 {offsets = [0, 384], sizes = [2, 128], strides = [1, 1]} : vector<2x1024xf32> to vector<2x128xf32>
    %23 = arith.addf %19, %22 : vector<2x128xf32>
    %24 = vector.extract_strided_slice %7 {offsets = [0, 512], sizes = [2, 128], strides = [1, 1]} : vector<2x1024xf32> to vector<2x128xf32>
    %25 = arith.addf %21, %24 : vector<2x128xf32>
    %26 = vector.extract_strided_slice %9 {offsets = [0, 512], sizes = [2, 128], strides = [1, 1]} : vector<2x1024xf32> to vector<2x128xf32>
    %27 = arith.addf %23, %26 : vector<2x128xf32>
    %28 = vector.extract_strided_slice %7 {offsets = [0, 640], sizes = [2, 128], strides = [1, 1]} : vector<2x1024xf32> to vector<2x128xf32>
    %29 = arith.addf %25, %28 : vector<2x128xf32>
    %30 = vector.extract_strided_slice %9 {offsets = [0, 640], sizes = [2, 128], strides = [1, 1]} : vector<2x1024xf32> to vector<2x128xf32>
    %31 = arith.addf %27, %30 : vector<2x128xf32>
    %32 = vector.extract_strided_slice %7 {offsets = [0, 768], sizes = [2, 128], strides = [1, 1]} : vector<2x1024xf32> to vector<2x128xf32>
    %33 = arith.addf %29, %32 : vector<2x128xf32>
    %34 = vector.extract_strided_slice %9 {offsets = [0, 768], sizes = [2, 128], strides = [1, 1]} : vector<2x1024xf32> to vector<2x128xf32>
    %35 = arith.addf %31, %34 : vector<2x128xf32>
    %36 = vector.extract_strided_slice %7 {offsets = [0, 896], sizes = [2, 128], strides = [1, 1]} : vector<2x1024xf32> to vector<2x128xf32>
    %37 = arith.addf %33, %36 : vector<2x128xf32>
    %38 = vector.extract_strided_slice %9 {offsets = [0, 896], sizes = [2, 128], strides = [1, 1]} : vector<2x1024xf32> to vector<2x128xf32>
    %39 = arith.addf %35, %38 : vector<2x128xf32>
    %c0_6 = arith.constant 0 : index
    %c0_7 = arith.constant 0 : index
    %40 = vector.load %arg6[%c0_6, %c0_7] : memref<2x128xf32, #tpu.memory_space<vmem>>, vector<2x128xf32>
    %41 = arith.addf %40, %37 : vector<2x128xf32>
    %c0_8 = arith.constant 0 : index
    %c0_9 = arith.constant 0 : index
    %42 = vector.load %arg6[%c0_8, %c0_9] : memref<2x128xf32, #tpu.memory_space<vmem>>, vector<2x128xf32>
    tpu.vector_store %arg6[%c0_8, %c0_9], %41 {strides = array<i32>} : memref<2x128xf32, #tpu.memory_space<vmem>>, vector<2x128xf32>,
    %c0_10 = arith.constant 0 : index
    %c0_11 = arith.constant 0 : index
    %43 = vector.load %arg7[%c0_10, %c0_11] : memref<2x128xf32, #tpu.memory_space<vmem>>, vector<2x128xf32>
    %44 = arith.addf %43, %39 : vector<2x128xf32>
    %c0_12 = arith.constant 0 : index
    %c0_13 = arith.constant 0 : index
    %45 = vector.load %arg7[%c0_12, %c0_13] : memref<2x128xf32, #tpu.memory_space<vmem>>, vector<2x128xf32>
    tpu.vector_store %arg7[%c0_12, %c0_13], %44 {strides = array<i32>} : memref<2x128xf32, #tpu.memory_space<vmem>>, vector<2x128xf32>,
    %c0_i32_14 = arith.constant 0 : i32
    %46 = arith.cmpi eq, %arg0, %c0_i32_14 : i32
    %47 = arith.extui %46 : i1 to i32
    %c0_i32_15 = arith.constant 0 : i32
    %48 = arith.cmpi ne, %47, %c0_i32_15 : i32
    scf.if %48 {
      %c0_16 = arith.constant 0 : index
      %c0_17 = arith.constant 0 : index
      %49 = memref.load %arg4[%c0_16, %c0_17] : memref<1x1xf32, #tpu.memory_space<smem>>
      %c0_18 = arith.constant 0 : index
      %c0_19 = arith.constant 0 : index
      %50 = vector.load %arg6[%c0_18, %c0_19] : memref<2x128xf32, #tpu.memory_space<vmem>>, vector<2x128xf32>
      %cst = arith.constant dense<0.000000e+00> : vector<2xf32>
      %51 = vector.multi_reduction <add>, %50, %cst [1] : vector<2x128xf32> to vector<2xf32>
      %52 = vector.shape_cast %51 : vector<2xf32> to vector<2x1xf32>
      %53 = vector.broadcast %49 : f32 to vector<2x1xf32>
      %54 = arith.addf %52, %53 : vector<2x1xf32>
      %c0_20 = arith.constant 0 : index
      %c0_21 = arith.constant 0 : index
      %55 = vector.load %arg7[%c0_20, %c0_21] : memref<2x128xf32, #tpu.memory_space<vmem>>, vector<2x128xf32>
      %cst_22 = arith.constant dense<0.000000e+00> : vector<2xf32>
      %56 = vector.multi_reduction <add>, %55, %cst_22 [1] : vector<2x128xf32> to vector<2xf32>
      %57 = vector.shape_cast %56 : vector<2xf32> to vector<2x1xf32>
      %58 = vector.broadcast %49 : f32 to vector<2x1xf32>
      %59 = arith.addf %57, %58 : vector<2x1xf32>
      %cst_23 = arith.constant 2.000000e+01 : f32
      %60 = vector.broadcast %cst_23 : f32 to vector<2x1xf32>
      %61 = arith.cmpf ogt, %54, %60 : vector<2x1xf32>
      %cst_24 = arith.constant 2.000000e+01 : f32
      %62 = vector.broadcast %cst_24 : f32 to vector<2x1xf32>
      %63 = arith.minimumf %54, %62 : vector<2x1xf32>
      %64 = math.exp %63 : vector<2x1xf32>
      %65 = math.log1p %64 : vector<2x1xf32>
      %66 = arith.select %61, %54, %65 : vector<2x1xi1>, vector<2x1xf32>
      %cst_25 = arith.constant 0.000000e+00 : f32
      %67 = vector.broadcast %cst_25 : f32 to vector<2x1xf32>
      %68 = arith.subf %67, %59 : vector<2x1xf32>
      %cst_26 = arith.constant 2.000000e+01 : f32
      %69 = vector.broadcast %cst_26 : f32 to vector<2x1xf32>
      %70 = arith.cmpf ogt, %68, %69 : vector<2x1xf32>
      %cst_27 = arith.constant 2.000000e+01 : f32
      %71 = vector.broadcast %cst_27 : f32 to vector<2x1xf32>
      %72 = arith.minimumf %68, %71 : vector<2x1xf32>
      %73 = math.exp %72 : vector<2x1xf32>
      %74 = math.log1p %73 : vector<2x1xf32>
      %75 = arith.select %70, %68, %74 : vector<2x1xi1>, vector<2x1xf32>
      %76 = arith.addf %66, %75 : vector<2x1xf32>
      %cst_28 = arith.constant dense<0.000000e+00> : vector<1xf32>
      %77 = vector.multi_reduction <add>, %76, %cst_28 [0] : vector<2x1xf32> to vector<1xf32>
      %78 = vector.shape_cast %77 : vector<1xf32> to vector<1x1xf32>
      %cst_29 = arith.constant 2.000000e+00 : f32
      %79 = vector.broadcast %cst_29 : f32 to vector<1x1xf32>
      %80 = arith.divf %78, %79 : vector<1x1xf32>
      %c0_30 = arith.constant 0 : index
      %c0_31 = arith.constant 0 : index
      %81 = vector.load %arg5[%c0_30, %c0_31] : memref<1x1xf32, #tpu.memory_space<vmem>>, vector<1x1xf32>
      tpu.vector_store %arg5[%c0_30, %c0_31], %80 {strides = array<i32>} : memref<1x1xf32, #tpu.memory_space<vmem>>, vector<1x1xf32>,
    } else {
    }
    return
  }
  func.func @transform_0(%arg0: i32) -> (i32, i32) {
    %c0_i32 = arith.constant 0 : i32
    %c0_i32_0 = arith.constant 0 : i32
    return %c0_i32, %arg0 : i32, i32
  }
  func.func @transform_1(%arg0: i32) -> (i32, i32) {
    %c0_i32 = arith.constant 0 : i32
    %c0_i32_0 = arith.constant 0 : i32
    return %c0_i32, %arg0 : i32, i32
  }
  func.func @transform_2(%arg0: i32) -> (i32, i32) {
    %c0_i32 = arith.constant 0 : i32
    %c0_i32_0 = arith.constant 0 : i32
    return %c0_i32, %arg0 : i32, i32
  }
  func.func @transform_3(%arg0: i32) -> (i32, i32) {
    %c0_i32 = arith.constant 0 : i32
    %c0_i32_0 = arith.constant 0 : i32
    %c0_i32_1 = arith.constant 0 : i32
    return %c0_i32, %c0_i32_0 : i32, i32
  }
  func.func @transform_4(%arg0: i32) -> (i32, i32) {
    %c0_i32 = arith.constant 0 : i32
    %c0_i32_0 = arith.constant 0 : i32
    %c0_i32_1 = arith.constant 0 : i32
    return %c0_i32, %c0_i32_0 : i32, i32
  }
}

</mosaic_0001>

<llo_original>
// kernel: tpu_custom_call.1
$region0: #{tpu_custom_call.1}
  #allocation0 [shape = 'u32[]', space=smem, size = 0x4, offset = 0x4, fixed_abs, tag = 'smem constant byte address 0x4 - core index']
  #allocation1 [shape = 'u32[72,128]{1,0:T(1,128)}', space=vmem, size = 0x9000, scoped, tag = 'internal scratch']
  #allocation2 [shape = 'f32[2,128]{1,0:T(2,128)}', space=vmem, size = 0x400, scoped, tag = 'scratch operand']
  #allocation3 [shape = 'f32[2,128]{1,0:T(2,128)}', space=vmem, size = 0x400, scoped, tag = 'scratch operand']
  #allocation4 [shape = 'f32[1,1]{1,0:T(1,128)S(6)}', space=smem, size = 0x200, scoped, tag = 'scoped memory for tpu_custom_call.1']
  %s0 = inlined_call_operand.hbm [shape: f32[2,1024], index: 0, kind: input, shape index: {}]
  %s1 = inlined_call_operand.hbm [shape: f32[2,1024], index: 1, kind: input, shape index: {}]
  %s2 = inlined_call_operand.hbm [shape: f32[1,1024], index: 2, kind: input, shape index: {}]
  %s3 = inlined_call_operand.<no memory space> [shape: f32[1,1], index: 3, kind: input, shape index: {}]
  %s4 = inlined_call_operand.hbm [shape: f32[1,1], index: 4, kind: output, shape index: {}]
  %s5 = sld [smem:[#allocation0]]
  $region46: #{tpu_custom_call.1} parent=0
    _
  %s7 = ssub.s32 1, %s5
  %s8 = scalar_select 0, %s7, %s5
  %9 = sst [smem:[#allocation4]] %s3
  $region1: #{tpu_custom_call.1} parent=0
    #allocation5 [shape = 'u8[8192]{0}', space=vmem, size = 0x2000, scoped, tag = 'input window, operand 0, single buffered']
    #allocation6 [shape = 's32[1]{0}', space=sflag, size = 0x4, scoped, tag = 'scoped memory for tpu_custom_call.1']
    #allocation7 [shape = 's32[1]{0}', space=sflag, size = 0x4, scoped, tag = 'scoped memory for tpu_custom_call.1']
    #allocation8 [shape = 'u8[8192]{0}', space=vmem, size = 0x2000, scoped, tag = 'input window, operand 1, single buffered']
    #allocation9 [shape = 's32[1]{0}', space=sflag, size = 0x4, scoped, tag = 'scoped memory for tpu_custom_call.1']
    #allocation10 [shape = 'u8[4096]{0}', space=vmem, size = 0x1000, scoped, tag = 'input window, operand 2, single buffered']
    #allocation11 [shape = 'u8[512]{0}', space=vmem, size = 0x400, scoped, tag = 'output window, operand 0, single buffered']
    %10 = vsyncpa [#allocation6], 0
    %11 = vsyncpa [#allocation9], 0
    %12 = vsyncpa [#allocation7], 0
    // Predicated region
    $region2: #{tpu_custom_call.1} parent=1 // pred_check
      _
    $region3: #{tpu_custom_call.1} parent=1 // pred_check_branch
      %14 = sbr.rel (0) target = $region5
    $region4: #{tpu_custom_call.1} parent=1 // pred_region
      %16 = vsyncadd [#allocation6], 0
      %s18 = sshll.u32 %s0, 4
      %s19 = int_to_ptr.hbm [resolvable:$true] %s18
      %s20 = sshll.u32 [#allocation5], 4
      %s21 = int_to_ptr.vmem [resolvable:$true] %s20
      %23 = dma.hbm_to_vmem [thread:$0]  %s19, 256, %s21, [#allocation6]
    $region5: #{tpu_custom_call.1} parent=1 // pred_fallthru
      _
    // Predicated region
    $region6: #{tpu_custom_call.1} parent=1 // pred_check
      _
    $region7: #{tpu_custom_call.1} parent=1 // pred_check_branch
      %25 = sbr.rel (0) target = $region9
    $region8: #{tpu_custom_call.1} parent=1 // pred_region
      %27 = vsyncadd [#allocation9], 0
      %s29 = sshll.u32 %s1, 4
      %s30 = int_to_ptr.hbm [resolvable:$true] %s29
      %s31 = sshll.u32 [#allocation8], 4
      %s32 = int_to_ptr.vmem [resolvable:$true] %s31
      %34 = dma.hbm_to_vmem [thread:$0]  %s30, 256, %s32, [#allocation9]
    $region9: #{tpu_custom_call.1} parent=1 // pred_fallthru
      _
    // Predicated region
    $region10: #{tpu_custom_call.1} parent=1 // pred_check
      _
    $region11: #{tpu_custom_call.1} parent=1 // pred_check_branch
      %36 = sbr.rel (0) target = $region13
    $region12: #{tpu_custom_call.1} parent=1 // pred_region
      %38 = vsyncadd [#allocation9], 0
      %s40 = sshll.u32 %s2, 4
      %s41 = int_to_ptr.hbm [resolvable:$true] %s40
      %s42 = sshll.u32 [#allocation10], 4
      %s43 = int_to_ptr.vmem [resolvable:$true] %s42
      %45 = dma.hbm_to_vmem [thread:$0]  %s41, 128, %s43, [#allocation9]
    $region13: #{tpu_custom_call.1} parent=1 // pred_fallthru
      _
    // Predicated region
    $region14: #{tpu_custom_call.1} parent=1 // pred_check
      _
    $region15: #{tpu_custom_call.1} parent=1 // pred_check_branch
      %47 = sbr.rel (0) target = $region17
    $region16: #{tpu_custom_call.1} parent=1 // pred_region
      _
    $region17: #{tpu_custom_call.1} parent=1 // pred_fallthru
      _
    // Predicated region
    $region18: #{tpu_custom_call.1} parent=1 // pred_check
      _
    $region19: #{tpu_custom_call.1} parent=1 // pred_check_branch
      %49 = sbr.rel (0) target = $region21
    $region20: #{tpu_custom_call.1} parent=1 // pred_region
      %51 = dma.done [#allocation6], 256
    $region21: #{tpu_custom_call.1} parent=1 // pred_fallthru
      _
    // Predicated region
    $region22: #{tpu_custom_call.1} parent=1 // pred_check
      _
    $region23: #{tpu_custom_call.1} parent=1 // pred_check_branch
      %53 = sbr.rel (0) target = $region25
    $region24: #{tpu_custom_call.1} parent=1 // pred_region
      %55 = dma.done [#allocation9], 256
    $region25: #{tpu_custom_call.1} parent=1 // pred_fallthru
      _
    // Predicated region
    $region26: #{tpu_custom_call.1} parent=1 // pred_check
      _
    $region27: #{tpu_custom_call.1} parent=1 // pred_check_branch
      %57 = sbr.rel (0) target = $region29
    $region28: #{tpu_custom_call.1} parent=1 // pred_region
      %59 = dma.done [#allocation9], 128
    $region29: #{tpu_custom_call.1} parent=1 // pred_fallthru
      _
    %p60 = scmp.eq.s32.totalorder 0, 0
    // Predicated region
    $region30: #{tpu_custom_call.1} parent=1 // pred_check
      %p61 = pneg %p60
    $region31: #{tpu_custom_call.1} parent=1 // pred_check_branch
      %63 = sbr.rel (%p61) target = $region33
    $region32: #{tpu_custom_call.1} parent=1 // pred_region
      %64 = vst [vmem:[#allocation2] sm:$0x3] 0.0
      %65 = vst [vmem:[#allocation3] sm:$0x3] 0.0
    $region33: #{tpu_custom_call.1} parent=1 // pred_fallthru
      _
    %v66 = vld [vmem:[#allocation10] sm:$0xff]
    %v67 = vld [vmem:[#allocation5] sm:$0xff]
    %v68 = vld [vmem:[#allocation5 + $0x8] sm:$0xff]
    %v69 = vld [vmem:[#allocation8] sm:$0xff]
    %v70 = vld [vmem:[#allocation8 + $0x8] sm:$0xff]
    %v72 = vperm.slane %v66, 0
    %v73 = vperm.slane %v66, 1
    %v74 = vperm.slane %v66, 2
    %v75 = vperm.slane %v66, 3
    %v76 = vperm.slane %v66, 4
    %v77 = vperm.slane %v66, 5
    %v78 = vperm.slane %v66, 6
    %v79 = vperm.slane %v66, 7
    %v80 = vrot.slane %v73, 6
    %v81 = vrot.slane %v74, 4
    %v82 = vrot.slane %v75, 2
    %v83 = vrot.slane %v77, 6
    %v84 = vrot.slane %v78, 4
    %v85 = vrot.slane %v79, 2
    %vm86 = vcmask 1041408
    %v87 = vsel %vm86, %v72, %v80
    %vm88 = vcmask 1045508
    %v89 = vsel %vm88, %v81, %v82
    %vm90 = vcmask 1043456
    %v91 = vsel %vm90, %v87, %v89
    %v92 = vsel %vm86, %v76, %v83
    %v93 = vsel %vm88, %v84, %v85
    %v94 = vsel %vm90, %v92, %v93
    %v97 = vmul.f32 %v67, %v91
    %v98 = vmul.f32 %v68, %v94
    %v99 = vmul.f32 %v69, %v91
    %v100 = vmul.f32 %v70, %v94
    %v102 = vrot.slane %v97, 2
    %v104 = vadd.f32 %v97, %v102
    %v106 = vrot.slane %v99, 2
    %v108 = vadd.f32 %v99, %v106
    %v109 = vrot.slane %v97, 4
    %v111 = vadd.f32 %v104, %v109
    %v112 = vrot.slane %v99, 4
    %v114 = vadd.f32 %v108, %v112
    %v115 = vrot.slane %v97, 6
    %v117 = vadd.f32 %v111, %v115
    %v118 = vrot.slane %v99, 6
    %v120 = vadd.f32 %v114, %v118
    %v121 = vadd.f32 %v117, %v98
    %v122 = vadd.f32 %v120, %v100
    %v124 = vrot.slane %v98, 2
    %v126 = vadd.f32 %v121, %v124
    %v128 = vrot.slane %v100, 2
    %v130 = vadd.f32 %v122, %v128
    %v131 = vrot.slane %v98, 4
    %v133 = vadd.f32 %v126, %v131
    %v134 = vrot.slane %v100, 4
    %v136 = vadd.f32 %v130, %v134
    %v137 = vrot.slane %v98, 6
    %v139 = vadd.f32 %v133, %v137
    %v140 = vrot.slane %v100, 6
    %v142 = vadd.f32 %v136, %v140
    %v143 = vld [vmem:[#allocation2] sm:$0x3]
    %v144 = vadd.f32 %v143, %v139
    %145 = vst [vmem:[#allocation2] sm:$0x3] %v144
    %v146 = vld [vmem:[#allocation3] sm:$0x3]
    %v147 = vadd.f32 %v146, %v142
    %148 = vst [vmem:[#allocation3] sm:$0x3] %v147
    // Predicated region
    $region34: #{tpu_custom_call.1} parent=1 // pred_check
      %p149 = pneg %p60
    $region35: #{tpu_custom_call.1} parent=1 // pred_check_branch
      %151 = sbr.rel (%p149) target = $region37
    $region36: #{tpu_custom_call.1} parent=1 // pred_region
      %s152 = sld [smem:[#allocation4]]
      %v153 = vld [vmem:[#allocation2] sm:$0x3]
      %v154 = vsel %vm86, %v153, 0.0
      %155 = vadd.xlane.f32.xlu0 %v154
      %v156 = vpop.xlane.xlu0 %155
      %v157 = vstv %s152
      %v158 = vadd.f32 %v156, %v157
      %v159 = vld [vmem:[#allocation3] sm:$0x3]
      %v160 = vsel %vm86, %v159, 0.0
      %161 = vadd.xlane.f32.xlu0 %v160
      %v162 = vpop.xlane.xlu0 %161
      %v163 = vadd.f32 %v162, %v157
      %vm164 = vcmp.gt.f32.partialorder %v158, 20.0
      %v165 = vmin.f32 %v158, 20.0
      %v166 = vmul.f32 %v165, 1.442695
      %v167 = vpow.pop %v166
      %v168 = vadd.f32 %v167, 1.0
      %v169 = vlog2.pop %v168
      %v170 = vmul.f32 %v169, 0.6931472
      %v171 = vmul.f32 -0.5, %v167
      %v172 = vadd.f32 %v171, 1.0
      %v173 = vmul.f32 %v172, %v167
      %v174 = vand.u32 2147483647, %v167
      %vm175 = vcmp.lt.f32.partialorder %v174, 0.0004427343
      %v176 = vsel %vm175, %v173, %v170
      %v177 = vsel %vm164, %v158, %v176
      %v178 = vsub.f32 0.0, %v163
      %vm179 = vcmp.gt.f32.partialorder %v178, 20.0
      %v180 = vmin.f32 %v178, 20.0
      %v181 = vmul.f32 %v180, 1.442695
      %v182 = vpow.pop %v181
      %v183 = vadd.f32 %v182, 1.0
      %v184 = vlog2.pop %v183
      %v185 = vmul.f32 %v184, 0.6931472
      %v186 = vmul.f32 -0.5, %v182
      %v187 = vadd.f32 %v186, 1.0
      %v188 = vmul.f32 %v187, %v182
      %v189 = vand.u32 2147483647, %v182
      %vm190 = vcmp.lt.f32.partialorder %v189, 0.0004427343
      %v191 = vsel %vm190, %v188, %v185
      %v192 = vsel %vm179, %v178, %v191
      %v193 = vadd.f32 %v177, %v192
      %v194 = vsel %vm86, %v193, 0.0
      %v195 = vrot.slane %v194, 4
      %v196 = vadd.f32 %v194, %v195
      %v197 = vrot.slane %v196, 2
      %v198 = vadd.f32 %v196, %v197
      %v199 = vrot.slane %v198, 1
      %v200 = vadd.f32 %v198, %v199
      %v201 = vrcp.pop 2.0
      %v202 = vmul.f32 2.0, %v201
      %v203 = vsub.f32 1.0, %v202
      %v204 = vmul.f32 %v201, %v203
      %v205 = vadd.f32 %v201, %v204
      %vm206 = vweird.f32 %v201
      %v207 = vsel %vm206, %v201, %v205
      %v208 = vmul.f32 %v200, %v207
      %vm209 = vcmask 0
      %210 = vst.msk [vmem:[#allocation11] sm:$0x1] %vm209, %v208
    $region37: #{tpu_custom_call.1} parent=1 // pred_fallthru
      _
    // Predicated region
    $region38: #{tpu_custom_call.1} parent=1 // pred_check
      _
    $region39: #{tpu_custom_call.1} parent=1 // pred_check_branch
      %212 = sbr.rel (0) target = $region41
    $region40: #{tpu_custom_call.1} parent=1 // pred_region
      %214 = vsyncadd [#allocation7], 0
      %s216 = sshll.u32 [#allocation11], 4
      %s217 = int_to_ptr.vmem [resolvable:$true] %s216
      %s218 = sshll.u32 %s4, 4
      %s219 = int_to_ptr.hbm [resolvable:$true] %s218
      %221 = dma.vmem_to_hbm [thread:$0]  %s217, 16, %s219, [#allocation7]
    $region41: #{tpu_custom_call.1} parent=1 // pred_fallthru
      _
    // Predicated region
    $region42: #{tpu_custom_call.1} parent=1 // pred_check
      _
    $region43: #{tpu_custom_call.1} parent=1 // pred_check_branch
      %223 = sbr.rel (0) target = $region45
    $region44: #{tpu_custom_call.1} parent=1 // pred_region
      %225 = dma.done [#allocation7], 16
    $region45: #{tpu_custom_call.1} parent=1 // pred_fallthru
      _
    %226 = vsyncpa [#allocation6], 1
    %227 = vsyncpa [#allocation9], 1
    %228 = vsyncpa [#allocation7], 1

</llo_original>
